<compile_context>
chip_gen: v5e
topology: v5e:2x2
jax: 0.10.0
libtpu: 0.0.40
codegen_flags: <defaults>
</compile_context>

<pallas_src>
import jax
import jax.numpy as jnp
from jax import lax
from jax.experimental import pallas as pl
from jax.experimental.pallas import tpu as pltpu


# ----------------------------------------------------------------------------
# Tiling helpers
# ----------------------------------------------------------------------------

_VREG_FILE_BYTES = 64 * 4096                       # 64 vregs x 4 KiB
# Two f32 accumulators (acc_r, acc_i) must fit in <= half the register file.
_ACC_ELEMS_CAP = (_VREG_FILE_BYTES // 2) // (2 * 4)     # = 16384 elements


def _round_up(n, m):
    return ((n + m - 1) // m) * m


def _largest_divisor(n, cap):
    for d in range(min(n, cap), 0, -1):
        if n % d == 0:
            return d
    return 1


def _vmem_budget_bytes():
    """(usable_budget, capacity) in bytes for the current TPU generation."""
    try:
        cap = int(pltpu.get_tpu_info().vmem_capacity_bytes)
    except Exception:
        cap = 64 * 2 ** 20            # conservative: v7x per-TensorCore VMEM
    # Leave compiler headroom; ~48 MiB usable on v7x, ~100 MiB on v5e/v6e.
    budget = min(cap - 16 * 2 ** 20, 100 * 2 ** 20)
    return max(budget, 16 * 2 ** 20), cap


def _pick_co_tile(cout):
    """co_tile must be a multiple of 8 (sublane tiling) or equal to Cout."""
    if cout <= 32:
        return cout
    for d in range(32, 7, -1):
        if cout % d == 0 and d % 8 == 0:
            return d
    return cout                        # fall back to the full dim (always legal)


def _tile_footprint_bytes(b_tile, cin, co_tile, m_tile):
    """Double-buffered VMEM footprint of one grid step (f32, sublane-padded)."""
    x_blk = b_tile * _round_up(cin, 8) * m_tile * 4
    w_blk = cin * _round_up(co_tile, 8) * m_tile * 4
    o_blk = b_tile * _round_up(co_tile, 8) * m_tile * 4
    # 2 arrays of each kind (real + imag), x2 for pipeline double-buffering.
    return 2 * 2 * (x_blk + w_blk + o_blk)


def _choose_tiles(b, cin, cout, m_pad, budget_bytes):
    """Pick (b_tile, co_tile, m_tile) under the VMEM budget and the vreg cap."""
    co_tile = _pick_co_tile(cout)
    b_tile = _largest_divisor(b, 4)

    m_tile = 128
    for mt in range(m_pad, 127, -128):
        if m_pad % mt:
            continue
        if b_tile * co_tile * mt > _ACC_ELEMS_CAP:          # accs stay in vregs
            continue
        if _tile_footprint_bytes(b_tile, cin, co_tile, mt) > budget_bytes:
            continue
        m_tile = mt
        break

    # v7x has 2 TensorCores: make sure there are >= 2 parallel grid units.
    n_units = (m_pad // m_tile) * (cout // co_tile) * (b // b_tile)
    if n_units < 2 and b > 1:
        b_tile = _largest_divisor(b, max(1, b // 2))

    return b_tile, co_tile, m_tile


# ----------------------------------------------------------------------------
# Kernel
# ----------------------------------------------------------------------------

def _spectral_mul_kernel(xr_ref, xi_ref, wr_ref, wi_ref, or_ref, oi_ref):
    """One (mode_tile, cout_tile, batch_tile) grid point of the complex
    channel contraction  out[b, o, m] = sum_i x[b, i, m] * w[i, o, m].

    xr/xi : (b_tile, Cin,     Mt)   retained Fourier modes (real / imag)
    wr/wi : (Cin,    co_tile, Mt)   weights; wr_ref[i] is a contiguous,
                                    tile-aligned (co_tile, Mt) plane
    or/oi : (b_tile, co_tile, Mt)

    Classic 4-multiply complex product, accumulated over Cin on the VPU with
    both f32 accumulators vreg-resident (tile sizes guarantee the fit).
    """
    b_tile, cin, mt = xr_ref.shape
    co_tile = wr_ref.shape[1]
    acc_shape = (b_tile, co_tile, mt)

    def contract(i, acc_r, acc_i, *, dynamic):
        if dynamic:
            wr = wr_ref[i]                                  # (co_tile, mt)
            wi = wi_ref[i]
            xr_row = xr_ref[:, pl.ds(i, 1), :]              # (b_tile, 1, mt)
            xi_row = xi_ref[:, pl.ds(i, 1), :]
        else:
            wr = wr_ref[i]
            wi = wi_ref[i]
            xr_row = xr_ref[:, i, :][:, None, :]
            xi_row = xi_ref[:, i, :][:, None, :]
        # Hoist the sublane broadcasts: one explicit broadcast per array per
        # Cin step, reused by both products (JAX does not CSE broadcasts).
        xr = jnp.broadcast_to(xr_row, acc_shape)
        xi = jnp.broadcast_to(xi_row, acc_shape)
        wr = wr[None, :, :]                                 # leading-dim bcast
        wi = wi[None, :, :]
        acc_r = acc_r + (xr * wr - xi * wi)                 # Re
        acc_i = acc_i + (xr * wi + xi * wr)                 # Im
        return acc_r, acc_i

    acc_r = jnp.zeros(acc_shape, jnp.float32)
    acc_i = jnp.zeros(acc_shape, jnp.float32)

    if cin < 16:
        # Small Cin (demo): fully-unrolled static loop.
        for i in range(cin):
            acc_r, acc_i = contract(i, acc_r, acc_i, dynamic=False)
    else:
        # Large Cin: partially-unrolled loop bounds live ranges / vreg pressure
        # while keeping scheduler visibility.
        def body(i, carry):
            return contract(i, *carry, dynamic=True)
        acc_r, acc_i = lax.fori_loop(0, cin, body, (acc_r, acc_i), unroll=8)

    or_ref[...] = acc_r
    oi_ref[...] = acc_i


# ----------------------------------------------------------------------------
# Host-side wrappers
# ----------------------------------------------------------------------------

def prepare_spectral_weights(weights1, weights2):
    """One-time weight preprocessing (per-layer static; hoist out of hot path).

    weights1/2 : (Cin, Cout, modes1, modes2) complex
    returns    : wr, wi each (Cin, Cout, M_pad) float32,
                 M_pad = round_up(2*modes1*modes2, 128).
    Cin-major layout -> the kernel's per-input-channel weight slice is a
    contiguous, tile-aligned plane (no sublane-strided loads).
    """
    cin, cout, m1, m2 = weights1.shape
    m_total = 2 * m1 * m2
    m_pad = max(128, _round_up(m_total, 128))

    w = jnp.concatenate([weights1, weights2], axis=2)      # (Cin, Cout, 2*m1, m2)
    w = w.reshape(cin, cout, m_total)
    wr = jnp.real(w).astype(jnp.float32)
    wi = jnp.imag(w).astype(jnp.float32)

    pad = m_pad - m_total
    if pad:
        # NOTE: for very small 2*modes1*modes2 (like the demo's 32 -> 128) most
        # of the lane axis is zero padding; real FNO sizes (e.g. 288 -> 384)
        # keep the waste small.
        wr = jnp.pad(wr, ((0, 0), (0, 0), (0, pad)))
        wi = jnp.pad(wi, ((0, 0), (0, 0), (0, pad)))
    return wr, wi


def compl_mul_modes_pallas(x_modes, wr, wi):
    """Fused einsum('bixy,ioxy->boxy') over BOTH retained-mode blocks.

    x_modes : (B, Cin, 2*modes1, modes2) complex  (low block stacked over high)
    wr/wi   : (Cin, Cout, M_pad) float32 from prepare_spectral_weights
    returns : (B, Cout, 2*modes1, modes2) complex64
    """
    b, cin, m_rows, m_cols = x_modes.shape
    cout = wr.shape[1]
    m_pad = wr.shape[-1]
    m_total = m_rows * m_cols

    xr = jnp.real(x_modes).reshape(b, cin, m_total).astype(jnp.float32)
    xi = jnp.imag(x_modes).reshape(b, cin, m_total).astype(jnp.float32)
    pad = m_pad - m_total
    if pad:
        xr = jnp.pad(xr, ((0, 0), (0, 0), (0, pad)))
        xi = jnp.pad(xi, ((0, 0), (0, 0), (0, pad)))

    budget, vmem_cap = _vmem_budget_bytes()
    b_tile, co_tile, m_tile = _choose_tiles(b, cin, cout, m_pad, budget)
    footprint = _tile_footprint_bytes(b_tile, cin, co_tile, m_tile)
    # Actual pipelined footprint + headroom; never below the real footprint.
    vmem_limit = int(min(max(footprint + 4 * 2 ** 20, 16 * 2 ** 20),
                         vmem_cap - 4 * 2 ** 20))

    # Batch innermost: the weight block index (m, co) is constant along b, so
    # each weight tile is DMA'd once and stays VMEM-resident across the batch.
    grid = (m_pad // m_tile, cout // co_tile, b // b_tile)

    x_spec = pl.BlockSpec((b_tile, cin, m_tile), lambda m, co, bb: (bb, 0, m))
    # (Weight tiles are capped by co_tile, so double-buffering them fits the
    #  budget on all generations; pl.Buffered(1) would be a further v7x lever.)
    w_spec = pl.BlockSpec((cin, co_tile, m_tile), lambda m, co, bb: (0, co, m))
    o_spec = pl.BlockSpec((b_tile, co_tile, m_tile), lambda m, co, bb: (bb, co, m))

    out_r, out_i = pl.pallas_call(
        _spectral_mul_kernel,
        out_shape=(
            jax.ShapeDtypeStruct((b, cout, m_pad), jnp.float32),
            jax.ShapeDtypeStruct((b, cout, m_pad), jnp.float32),
        ),
        grid=grid,
        in_specs=[x_spec, x_spec, w_spec, w_spec],
        out_specs=(o_spec, o_spec),
        compiler_params=pltpu.CompilerParams(
            dimension_semantics=("parallel", "parallel", "parallel"),
            vmem_limit_bytes=vmem_limit,
        ),
    )(xr, xi, wr, wi)

    out = lax.complex(out_r[:, :, :m_total], out_i[:, :, :m_total])
    return out.reshape(b, cout, m_rows, m_cols)


def spectral_conv2d_forward(x, weights1, weights2, modes1, modes2):
    """Forward pass matching the PyTorch SpectralConv2d module.

    x        : (B, Cin, H, W) float32  (NCHW)
    weights1 : (Cin, Cout, modes1, modes2) complex64
    weights2 : (Cin, Cout, modes1, modes2) complex64
    returns  : (B, Cout, H, W) float32
    """
    b, cin, h, w = x.shape
    cout = weights1.shape[1]
    # The low/high retained-row blocks must not overlap (as in reference FNO).
    assert 2 * modes1 <= h and modes2 <= w // 2 + 1, \
        "retained modes must fit in the rfft2 grid"

    # TODO(synk): FFT has no Pallas primitive; rfft2/irfft2 stay in plain JAX.
    x_ft = jnp.fft.rfft2(x)                      # (B, Cin, H, W//2+1) complex64

    # Gather the retained modes for BOTH blocks and fuse into one kernel call.
    x_modes = jnp.concatenate(
        [x_ft[:, :, :modes1, :modes2], x_ft[:, :, h - modes1:, :modes2]], axis=2
    )                                            # (B, Cin, 2*modes1, modes2)

    # In a real model, do this once at parameter-load time and reuse.
    wr, wi = prepare_spectral_weights(weights1, weights2)

    out_modes = compl_mul_modes_pallas(x_modes, wr, wi)   # (B, Cout, 2*m1, m2)

    out_ft = jnp.zeros((b, cout, h, w // 2 + 1), dtype=x_ft.dtype)
    out_ft = out_ft.at[:, :, :modes1, :modes2].set(out_modes[:, :, :modes1])
    out_ft = out_ft.at[:, :, h - modes1:, :modes2].set(out_modes[:, :, modes1:])

    return jnp.fft.irfft2(out_ft, s=(h, w)).astype(x.dtype)


def _reference_forward(x, w1, w2, modes1, modes2):
    """Pure-JAX reference (mirrors the PyTorch code exactly)."""
    b, cin, h, w = x.shape
    cout = w1.shape[1]
    x_ft = jnp.fft.rfft2(x)
    mul = lambda a, ww: jnp.einsum('bixy,ioxy->boxy', a, ww)
    out_ft = jnp.zeros((b, cout, h, w // 2 + 1), dtype=jnp.complex64)
    out_ft = out_ft.at[:, :, :modes1, :modes2].set(mul(x_ft[:, :, :modes1, :modes2], w1))
    out_ft = out_ft.at[:, :, h - modes1:, :modes2].set(mul(x_ft[:, :, h - modes1:, :modes2], w2))
    return jnp.fft.irfft2(out_ft, s=(h, w))


if __name__ == "__main__":
    # Small, deterministic configuration.
    B, Cin, Cout = 2, 4, 4
    H, W = 16, 16
    modes1, modes2 = 4, 4

    key = jax.random.PRNGKey(0)
    kx, k1r, k1i, k2r, k2i = jax.random.split(key, 5)

    x = jax.random.normal(kx, (B, Cin, H, W), dtype=jnp.float32)

    # PyTorch: scale * torch.rand(..., dtype=cfloat) -> uniform [0,1) real & imag.
    scale = 1.0 / (Cin * Cout)
    w1 = (scale * (jax.random.uniform(k1r, (Cin, Cout, modes1, modes2))
                   + 1j * jax.random.uniform(k1i, (Cin, Cout, modes1, modes2)))
          ).astype(jnp.complex64)
    w2 = (scale * (jax.random.uniform(k2r, (Cin, Cout, modes1, modes2))
                   + 1j * jax.random.uniform(k2i, (Cin, Cout, modes1, modes2)))
          ).astype(jnp.complex64)

    out = spectral_conv2d_forward(x, w1, w2, modes1, modes2)
    out = jax.block_until_ready(out)

    ref = jax.block_until_ready(_reference_forward(x, w1, w2, modes1, modes2))
    assert out.shape == (B, Cout, H, W)
    assert jnp.allclose(out, ref, rtol=1e-4, atol=1e-4)

    print("KERNEL_OK")
</pallas_src>

<mosaic_0001>
module attributes {stable_mosaic.version = 11 : i64} {
  func.func @_spectral_mul_kernel(%arg0: i32, %arg1: i32, %arg2: i32, %arg3: memref<1x4x128xf32, #tpu.memory_space<vmem>>, %arg4: memref<1x4x128xf32, #tpu.memory_space<vmem>>, %arg5: memref<4x4x128xf32, #tpu.memory_space<vmem>>, %arg6: memref<4x4x128xf32, #tpu.memory_space<vmem>>, %arg7: memref<1x4x128xf32, #tpu.memory_space<vmem>>, %arg8: memref<1x4x128xf32, #tpu.memory_space<vmem>>) attributes {dimension_semantics = [#tpu.dimension_semantics<parallel>, #tpu.dimension_semantics<parallel>, #tpu.dimension_semantics<parallel>], iteration_bounds = array<i64: 1, 1, 2>, scalar_prefetch = 0 : i64, scratch_operands = 0 : i64, tpu.core_type = #tpu.core_type<tc>, window_params = [{transform_indices = @transform_0, window_bounds = array<i64: 1, 4, 128>}, {transform_indices = @transform_1, window_bounds = array<i64: 1, 4, 128>}, {transform_indices = @transform_2, window_bounds = array<i64: 4, 4, 128>}, {transform_indices = @transform_3, window_bounds = array<i64: 4, 4, 128>}, {transform_indices = @transform_4, window_bounds = array<i64: 1, 4, 128>}, {transform_indices = @transform_5, window_bounds = array<i64: 1, 4, 128>}]} {
    %cst = arith.constant 0.000000e+00 : f32
    %0 = vector.broadcast %cst : f32 to vector<1x4x128xf32>
    %cst_0 = arith.constant 0.000000e+00 : f32
    %1 = vector.broadcast %cst_0 : f32 to vector<1x4x128xf32>
    %c0 = arith.constant 0 : index
    %c0_1 = arith.constant 0 : index
    %c0_2 = arith.constant 0 : index
    %2 = vector.load %arg5[%c0, %c0_1, %c0_2] : memref<4x4x128xf32, #tpu.memory_space<vmem>>, vector<1x4x128xf32>
    %3 = vector.shape_cast %2 : vector<1x4x128xf32> to vector<4x128xf32>
    %c0_3 = arith.constant 0 : index
    %c0_4 = arith.constant 0 : index
    %c0_5 = arith.constant 0 : index
    %4 = vector.load %arg6[%c0_3, %c0_4, %c0_5] : memref<4x4x128xf32, #tpu.memory_space<vmem>>, vector<1x4x128xf32>
    %5 = vector.shape_cast %4 : vector<1x4x128xf32> to vector<4x128xf32>
    %c0_6 = arith.constant 0 : index
    %c0_7 = arith.constant 0 : index
    %c0_8 = arith.constant 0 : index
    %6 = vector.load %arg3[%c0_6, %c0_7, %c0_8] : memref<1x4x128xf32, #tpu.memory_space<vmem>>, vector<1x1x128xf32>
    %7 = vector.shape_cast %6 : vector<1x1x128xf32> to vector<1x128xf32>
    %8 = vector.shape_cast %7 : vector<1x128xf32> to vector<1x1x128xf32>
    %c0_9 = arith.constant 0 : index
    %c0_10 = arith.constant 0 : index
    %c0_11 = arith.constant 0 : index
    %9 = vector.load %arg4[%c0_9, %c0_10, %c0_11] : memref<1x4x128xf32, #tpu.memory_space<vmem>>, vector<1x1x128xf32>
    %10 = vector.shape_cast %9 : vector<1x1x128xf32> to vector<1x128xf32>
    %11 = vector.shape_cast %10 : vector<1x128xf32> to vector<1x1x128xf32>
    %12 = vector.shape_cast %8 : vector<1x1x128xf32> to vector<1x1x128xf32>
    %13 = vector.broadcast %12 : vector<1x1x128xf32> to vector<1x4x128xf32>
    %14 = vector.shape_cast %11 : vector<1x1x128xf32> to vector<1x1x128xf32>
    %15 = vector.broadcast %14 : vector<1x1x128xf32> to vector<1x4x128xf32>
    %16 = vector.shape_cast %3 : vector<4x128xf32> to vector<1x4x128xf32>
    %17 = vector.shape_cast %5 : vector<4x128xf32> to vector<1x4x128xf32>
    %18 = arith.mulf %13, %16 : vector<1x4x128xf32>
    %19 = arith.mulf %15, %17 : vector<1x4x128xf32>
    %20 = arith.subf %18, %19 : vector<1x4x128xf32>
    %21 = arith.addf %0, %20 : vector<1x4x128xf32>
    %22 = arith.mulf %13, %17 : vector<1x4x128xf32>
    %23 = arith.mulf %15, %16 : vector<1x4x128xf32>
    %24 = arith.addf %22, %23 : vector<1x4x128xf32>
    %25 = arith.addf %1, %24 : vector<1x4x128xf32>
    %c1 = arith.constant 1 : index
    %c0_12 = arith.constant 0 : index
    %c0_13 = arith.constant 0 : index
    %26 = vector.load %arg5[%c1, %c0_12, %c0_13] : memref<4x4x128xf32, #tpu.memory_space<vmem>>, vector<1x4x128xf32>
    %27 = vector.shape_cast %26 : vector<1x4x128xf32> to vector<4x128xf32>
    %c1_14 = arith.constant 1 : index
    %c0_15 = arith.constant 0 : index
    %c0_16 = arith.constant 0 : index
    %28 = vector.load %arg6[%c1_14, %c0_15, %c0_16] : memref<4x4x128xf32, #tpu.memory_space<vmem>>, vector<1x4x128xf32>
    %29 = vector.shape_cast %28 : vector<1x4x128xf32> to vector<4x128xf32>
    %c0_17 = arith.constant 0 : index
    %c1_18 = arith.constant 1 : index
    %c0_19 = arith.constant 0 : index
    %30 = vector.load %arg3[%c0_17, %c1_18, %c0_19] : memref<1x4x128xf32, #tpu.memory_space<vmem>>, vector<1x1x128xf32>
    %31 = vector.shape_cast %30 : vector<1x1x128xf32> to vector<1x128xf32>
    %32 = vector.shape_cast %31 : vector<1x128xf32> to vector<1x1x128xf32>
    %c0_20 = arith.constant 0 : index
    %c1_21 = arith.constant 1 : index
    %c0_22 = arith.constant 0 : index
    %33 = vector.load %arg4[%c0_20, %c1_21, %c0_22] : memref<1x4x128xf32, #tpu.memory_space<vmem>>, vector<1x1x128xf32>
    %34 = vector.shape_cast %33 : vector<1x1x128xf32> to vector<1x128xf32>
    %35 = vector.shape_cast %34 : vector<1x128xf32> to vector<1x1x128xf32>
    %36 = vector.shape_cast %32 : vector<1x1x128xf32> to vector<1x1x128xf32>
    %37 = vector.broadcast %36 : vector<1x1x128xf32> to vector<1x4x128xf32>
    %38 = vector.shape_cast %35 : vector<1x1x128xf32> to vector<1x1x128xf32>
    %39 = vector.broadcast %38 : vector<1x1x128xf32> to vector<1x4x128xf32>
    %40 = vector.shape_cast %27 : vector<4x128xf32> to vector<1x4x128xf32>
    %41 = vector.shape_cast %29 : vector<4x128xf32> to vector<1x4x128xf32>
    %42 = arith.mulf %37, %40 : vector<1x4x128xf32>
    %43 = arith.mulf %39, %41 : vector<1x4x128xf32>
    %44 = arith.subf %42, %43 : vector<1x4x128xf32>
    %45 = arith.addf %21, %44 : vector<1x4x128xf32>
    %46 = arith.mulf %37, %41 : vector<1x4x128xf32>
    %47 = arith.mulf %39, %40 : vector<1x4x128xf32>
    %48 = arith.addf %46, %47 : vector<1x4x128xf32>
    %49 = arith.addf %25, %48 : vector<1x4x128xf32>
    %c2 = arith.constant 2 : index
    %c0_23 = arith.constant 0 : index
    %c0_24 = arith.constant 0 : index
    %50 = vector.load %arg5[%c2, %c0_23, %c0_24] : memref<4x4x128xf32, #tpu.memory_space<vmem>>, vector<1x4x128xf32>
    %51 = vector.shape_cast %50 : vector<1x4x128xf32> to vector<4x128xf32>
    %c2_25 = arith.constant 2 : index
    %c0_26 = arith.constant 0 : index
    %c0_27 = arith.constant 0 : index
    %52 = vector.load %arg6[%c2_25, %c0_26, %c0_27] : memref<4x4x128xf32, #tpu.memory_space<vmem>>, vector<1x4x128xf32>
    %53 = vector.shape_cast %52 : vector<1x4x128xf32> to vector<4x128xf32>
    %c0_28 = arith.constant 0 : index
    %c2_29 = arith.constant 2 : index
    %c0_30 = arith.constant 0 : index
    %54 = vector.load %arg3[%c0_28, %c2_29, %c0_30] : memref<1x4x128xf32, #tpu.memory_space<vmem>>, vector<1x1x128xf32>
    %55 = vector.shape_cast %54 : vector<1x1x128xf32> to vector<1x128xf32>
    %56 = vector.shape_cast %55 : vector<1x128xf32> to vector<1x1x128xf32>
    %c0_31 = arith.constant 0 : index
    %c2_32 = arith.constant 2 : index
    %c0_33 = arith.constant 0 : index
    %57 = vector.load %arg4[%c0_31, %c2_32, %c0_33] : memref<1x4x128xf32, #tpu.memory_space<vmem>>, vector<1x1x128xf32>
    %58 = vector.shape_cast %57 : vector<1x1x128xf32> to vector<1x128xf32>
    %59 = vector.shape_cast %58 : vector<1x128xf32> to vector<1x1x128xf32>
    %60 = vector.shape_cast %56 : vector<1x1x128xf32> to vector<1x1x128xf32>
    %61 = vector.broadcast %60 : vector<1x1x128xf32> to vector<1x4x128xf32>
    %62 = vector.shape_cast %59 : vector<1x1x128xf32> to vector<1x1x128xf32>
    %63 = vector.broadcast %62 : vector<1x1x128xf32> to vector<1x4x128xf32>
    %64 = vector.shape_cast %51 : vector<4x128xf32> to vector<1x4x128xf32>
    %65 = vector.shape_cast %53 : vector<4x128xf32> to vector<1x4x128xf32>
    %66 = arith.mulf %61, %64 : vector<1x4x128xf32>
    %67 = arith.mulf %63, %65 : vector<1x4x128xf32>
    %68 = arith.subf %66, %67 : vector<1x4x128xf32>
    %69 = arith.addf %45, %68 : vector<1x4x128xf32>
    %70 = arith.mulf %61, %65 : vector<1x4x128xf32>
    %71 = arith.mulf %63, %64 : vector<1x4x128xf32>
    %72 = arith.addf %70, %71 : vector<1x4x128xf32>
    %73 = arith.addf %49, %72 : vector<1x4x128xf32>
    %c3 = arith.constant 3 : index
    %c0_34 = arith.constant 0 : index
    %c0_35 = arith.constant 0 : index
    %74 = vector.load %arg5[%c3, %c0_34, %c0_35] : memref<4x4x128xf32, #tpu.memory_space<vmem>>, vector<1x4x128xf32>
    %75 = vector.shape_cast %74 : vector<1x4x128xf32> to vector<4x128xf32>
    %c3_36 = arith.constant 3 : index
    %c0_37 = arith.constant 0 : index
    %c0_38 = arith.constant 0 : index
    %76 = vector.load %arg6[%c3_36, %c0_37, %c0_38] : memref<4x4x128xf32, #tpu.memory_space<vmem>>, vector<1x4x128xf32>
    %77 = vector.shape_cast %76 : vector<1x4x128xf32> to vector<4x128xf32>
    %c0_39 = arith.constant 0 : index
    %c3_40 = arith.constant 3 : index
    %c0_41 = arith.constant 0 : index
    %78 = vector.load %arg3[%c0_39, %c3_40, %c0_41] : memref<1x4x128xf32, #tpu.memory_space<vmem>>, vector<1x1x128xf32>
    %79 = vector.shape_cast %78 : vector<1x1x128xf32> to vector<1x128xf32>
    %80 = vector.shape_cast %79 : vector<1x128xf32> to vector<1x1x128xf32>
    %c0_42 = arith.constant 0 : index
    %c3_43 = arith.constant 3 : index
    %c0_44 = arith.constant 0 : index
    %81 = vector.load %arg4[%c0_42, %c3_43, %c0_44] : memref<1x4x128xf32, #tpu.memory_space<vmem>>, vector<1x1x128xf32>
    %82 = vector.shape_cast %81 : vector<1x1x128xf32> to vector<1x128xf32>
    %83 = vector.shape_cast %82 : vector<1x128xf32> to vector<1x1x128xf32>
    %84 = vector.shape_cast %80 : vector<1x1x128xf32> to vector<1x1x128xf32>
    %85 = vector.broadcast %84 : vector<1x1x128xf32> to vector<1x4x128xf32>
    %86 = vector.shape_cast %83 : vector<1x1x128xf32> to vector<1x1x128xf32>
    %87 = vector.broadcast %86 : vector<1x1x128xf32> to vector<1x4x128xf32>
    %88 = vector.shape_cast %75 : vector<4x128xf32> to vector<1x4x128xf32>
    %89 = vector.shape_cast %77 : vector<4x128xf32> to vector<1x4x128xf32>
    %90 = arith.mulf %85, %88 : vector<1x4x128xf32>
    %91 = arith.mulf %87, %89 : vector<1x4x128xf32>
    %92 = arith.subf %90, %91 : vector<1x4x128xf32>
    %93 = arith.addf %69, %92 : vector<1x4x128xf32>
    %94 = arith.mulf %85, %89 : vector<1x4x128xf32>
    %95 = arith.mulf %87, %88 : vector<1x4x128xf32>
    %96 = arith.addf %94, %95 : vector<1x4x128xf32>
    %97 = arith.addf %73, %96 : vector<1x4x128xf32>
    %c0_45 = arith.constant 0 : index
    %c0_46 = arith.constant 0 : index
    %c0_47 = arith.constant 0 : index
    %98 = vector.load %arg7[%c0_45, %c0_46, %c0_47] : memref<1x4x128xf32, #tpu.memory_space<vmem>>, vector<1x4x128xf32>
    tpu.vector_store %arg7[%c0_45, %c0_46, %c0_47], %93 {strides = array<i32>} : memref<1x4x128xf32, #tpu.memory_space<vmem>>, vector<1x4x128xf32>,
    %c0_48 = arith.constant 0 : index
    %c0_49 = arith.constant 0 : index
    %c0_50 = arith.constant 0 : index
    %99 = vector.load %arg8[%c0_48, %c0_49, %c0_50] : memref<1x4x128xf32, #tpu.memory_space<vmem>>, vector<1x4x128xf32>
    tpu.vector_store %arg8[%c0_48, %c0_49, %c0_50], %97 {strides = array<i32>} : memref<1x4x128xf32, #tpu.memory_space<vmem>>, vector<1x4x128xf32>,
    return
  }
  func.func @transform_0(%arg0: i32, %arg1: i32, %arg2: i32) -> (i32, i32, i32) {
    %c0_i32 = arith.constant 0 : i32
    %c0_i32_0 = arith.constant 0 : i32
    return %arg2, %c0_i32, %arg0 : i32, i32, i32
  }
  func.func @transform_1(%arg0: i32, %arg1: i32, %arg2: i32) -> (i32, i32, i32) {
    %c0_i32 = arith.constant 0 : i32
    %c0_i32_0 = arith.constant 0 : i32
    return %arg2, %c0_i32, %arg0 : i32, i32, i32
  }
  func.func @transform_2(%arg0: i32, %arg1: i32, %arg2: i32) -> (i32, i32, i32) {
    %c0_i32 = arith.constant 0 : i32
    %c0_i32_0 = arith.constant 0 : i32
    return %c0_i32, %arg1, %arg0 : i32, i32, i32
  }
  func.func @transform_3(%arg0: i32, %arg1: i32, %arg2: i32) -> (i32, i32, i32) {
    %c0_i32 = arith.constant 0 : i32
    %c0_i32_0 = arith.constant 0 : i32
    return %c0_i32, %arg1, %arg0 : i32, i32, i32
  }
  func.func @transform_4(%arg0: i32, %arg1: i32, %arg2: i32) -> (i32, i32, i32) {
    %c0_i32 = arith.constant 0 : i32
    return %arg2, %arg1, %arg0 : i32, i32, i32
  }
  func.func @transform_5(%arg0: i32, %arg1: i32, %arg2: i32) -> (i32, i32, i32) {
    %c0_i32 = arith.constant 0 : i32
    return %arg2, %arg1, %arg0 : i32, i32, i32
  }
}

</mosaic_0001>

<llo_original>
// kernel: tpu_custom_call.1
$region0: #{tpu_custom_call.1}
  #allocation0 [shape = 'u32[]', space=smem, size = 0x4, offset = 0x4, fixed_abs, tag = 'smem constant byte address 0x4 - core index']
  #allocation1 [shape = 'u32[72,128]{1,0:T(1,128)}', space=vmem, size = 0x9000, scoped, tag = 'internal scratch']
  %s0 = inlined_call_operand.hbm [shape: f32[2,4,128], index: 0, kind: input, shape index: {}]
  %s1 = inlined_call_operand.hbm [shape: f32[2,4,128], index: 1, kind: input, shape index: {}]
  %s2 = inlined_call_operand.hbm [shape: f32[4,4,128], index: 2, kind: input, shape index: {}]
  %s3 = inlined_call_operand.hbm [shape: f32[4,4,128], index: 3, kind: input, shape index: {}]
  %s4 = inlined_call_operand.hbm [shape: f32[2,4,128], index: 4, kind: output, shape index: {0}]
  %s5 = inlined_call_operand.hbm [shape: f32[2,4,128], index: 5, kind: output, shape index: {1}]
  %6 = xla_tuple %s4, %s5
  %s7 = sld [smem:[#allocation0]]
  $region73: #{tpu_custom_call.1} parent=0
    _
  %s9 = ssub.s32 1, %s7
  %s10 = scalar_select 0, %s9, %s7
  $region1: #{tpu_custom_call.1} parent=0
    #allocation2 [shape = 'u8[4096]{0}', space=vmem, size = 0x1000, scoped, tag = 'input window, operand 0']
    #allocation3 [shape = 's32[2]{0}', space=sflag, size = 0x8, scoped, tag = 'scoped memory for tpu_custom_call.1']
    #allocation4 [shape = 's32[2]{0}', space=sflag, size = 0x8, scoped, tag = 'scoped memory for tpu_custom_call.1']
    #allocation5 [shape = 'u8[4096]{0}', space=vmem, size = 0x1000, scoped, tag = 'input window, operand 1']
    #allocation6 [shape = 's32[2]{0}', space=sflag, size = 0x8, scoped, tag = 'scoped memory for tpu_custom_call.1']
    #allocation7 [shape = 'u8[8192]{0}', space=vmem, size = 0x2000, scoped, tag = 'input window, operand 2, single buffered']
    #allocation8 [shape = 'u8[8192]{0}', space=vmem, size = 0x2000, scoped, tag = 'input window, operand 3, single buffered']
    #allocation9 [shape = 's32[1]{0}', space=sflag, size = 0x4, scoped, tag = 'scoped memory for tpu_custom_call.1']
    #allocation10 [shape = 'u8[4096]{0}', space=vmem, size = 0x1000, scoped, tag = 'output window, operand 0']
    #allocation11 [shape = 'u8[4096]{0}', space=vmem, size = 0x1000, scoped, tag = 'output window, operand 1']
    #allocation12 [shape = 's32[2]{0}', space=sflag, size = 0x8, scoped, tag = 'scoped memory for tpu_custom_call.1']
    %11 = vsyncpa [#allocation3], 0
    %s12 = scalar_lea.sflag [#allocation3], 1
    %13 = vsyncpa %s12, 0
    %14 = vsyncpa [#allocation6], 0
    %s15 = scalar_lea.sflag [#allocation6], 1
    %16 = vsyncpa %s15, 0
    %17 = vsyncpa [#allocation9], 0
    %18 = vsyncpa [#allocation4], 0
    %s19 = scalar_lea.sflag [#allocation4], 1
    %20 = vsyncpa %s19, 0
    %21 = vsyncpa [#allocation12], 0
    %s22 = scalar_lea.sflag [#allocation12], 1
    %23 = vsyncpa %s22, 0
    loop: start=0, step=1, limit=4
    $region2: #{tpu_custom_call.1} parent=1 // loop_pre_header
      _
    $region3: #{tpu_custom_call.1} parent=1 // loop_header
      %s25 = sphi 0, %s29
      %p26 = scmp.ge.s32.totalorder %s25, 4
      %s32 = sphi 0, %s51
      %s33 = sphi 0, %s47
      %s34 = sphi 0, %s43
      %s35 = sphi 0, %s32
      %s36 = sphi 0, %s33
      %s37 = sphi 0, %s34
      %s38 = sphi 0, %s35
      %s39 = sphi 0, %s36
      %s40 = sphi 0, %s37
      %s56 = sphi 0, %s58
      %s59 = sphi 0, %s56
      %s60 = sphi 0, %s59
      %s76 = sphi 0, %s60
      %s84 = sphi 0, %s86
      %s87 = sphi 0, %s84
      %s88 = sphi 0, %s87
      %s104 = sphi 0, %s88
      %s112 = sphi 0, %s114
      %s115 = sphi 0, %s112
      %s116 = sphi 0, %s115
      %s132 = sphi 0, %s116
      %s140 = sphi 0, %s142
      %s143 = sphi 0, %s140
      %s144 = sphi 0, %s143
      %s160 = sphi 0, %s144
      %s170 = sphi 0, %s172
      %s173 = sphi 0, %s170
      %s174 = sphi 0, %s173
      %s190 = sphi 0, %s174
      %s200 = sphi 0, %s202
      %s203 = sphi 0, %s200
      %s204 = sphi 0, %s203
      %s220 = sphi 0, %s204
    $region4: #{tpu_custom_call.1} parent=1 // loop_header_branch
      %28 = sbr.rel (%p26) target = $region8
    $region5: #{tpu_custom_call.1} parent=1 // loop_body
      %s30 = ssub.s32 %s25, 1
      %s31 = ssub.s32 %s25, 2
      %s41 = sadd.s32 1, %s34
      %p42 = scmp.ge.s32.totalorder %s41, 2
      %s43 = scalar_select %p42, 0, %s41
      %s44 = sadd.s32 1, %s33
      %s45 = scalar_select %p42, %s44, %s33
      %p46 = scmp.ge.s32.totalorder %s45, 1
      %s47 = scalar_select %p46, 0, %s45
      %s48 = sadd.s32 1, %s32
      %s49 = scalar_select %p46, %s48, %s32
      %p50 = scmp.ge.s32.totalorder %s49, 1
      %s51 = scalar_select %p50, 0, %s49
      %s52 = ssub.s32 %s34, %s43
      %s53 = ssub.s32 %s32, %s51
      %s54 = sor.u32 %s52, %s53
      %p55 = scmp.eq.s32.totalorder %s54, 0
      %s57 = sadd.s32 %s56, 1
      %s58 = scalar_select %p55, %s56, %s57
      %p61 = pneg %p55
      %p62 = scmp.eq.s32.totalorder %s25, 1
      %p63 = por %p61, %p62
      %p64 = scmp.ne.s32.totalorder %s56, %s59
      %p65 = scmp.eq.s32.totalorder %s25, 0
      %p66 = por %p64, %p65
      %p67 = scmp.ne.s32.totalorder %s56, %s59
      %p68 = scmp.eq.s32.totalorder %s30, 1
      %p69 = por %p67, %p68
      %p70 = scmp.ne.s32.totalorder %s59, %s60
      %p71 = scmp.eq.s32.totalorder %s30, 0
      %p72 = por %p70, %p71
      %p73 = scmp.ne.s32.totalorder %s59, %s60
      %p74 = scmp.eq.s32.totalorder %s31, 1
      %p75 = por %p73, %p74
      %p77 = scmp.ne.s32.totalorder %s60, %s76
      %p78 = scmp.eq.s32.totalorder %s31, 0
      %p79 = por %p77, %p78
      %s80 = ssub.s32 %s34, %s43
      %s81 = ssub.s32 %s32, %s51
      %s82 = sor.u32 %s80, %s81
      %p83 = scmp.eq.s32.totalorder %s82, 0
      %s85 = sadd.s32 %s84, 1
      %s86 = scalar_select %p83, %s84, %s85
      %p89 = pneg %p83
      %p90 = scmp.eq.s32.totalorder %s25, 1
      %p91 = por %p89, %p90
      %p92 = scmp.ne.s32.totalorder %s84, %s87
      %p93 = scmp.eq.s32.totalorder %s25, 0
      %p94 = por %p92, %p93
      %p95 = scmp.ne.s32.totalorder %s84, %s87
      %p96 = scmp.eq.s32.totalorder %s30, 1
      %p97 = por %p95, %p96
      %p98 = scmp.ne.s32.totalorder %s87, %s88
      %p99 = scmp.eq.s32.totalorder %s30, 0
      %p100 = por %p98, %p99
      %p101 = scmp.ne.s32.totalorder %s87, %s88
      %p102 = scmp.eq.s32.totalorder %s31, 1
      %p103 = por %p101, %p102
      %p105 = scmp.ne.s32.totalorder %s88, %s104
      %p106 = scmp.eq.s32.totalorder %s31, 0
      %p107 = por %p105, %p106
      %s108 = ssub.s32 %s33, %s47
      %s109 = ssub.s32 %s32, %s51
      %s110 = sor.u32 %s108, %s109
      %p111 = scmp.eq.s32.totalorder %s110, 0
      %s113 = sadd.s32 %s112, 1
      %s114 = scalar_select %p111, %s112, %s113
      %p117 = pneg %p111
      %p118 = scmp.eq.s32.totalorder %s25, 1
      %p119 = por %p117, %p118
      %p120 = scmp.ne.s32.totalorder %s112, %s115
      %p121 = scmp.eq.s32.totalorder %s25, 0
      %p122 = por %p120, %p121
      %p123 = scmp.ne.s32.totalorder %s112, %s115
      %p124 = scmp.eq.s32.totalorder %s30, 1
      %p125 = por %p123, %p124
      %p126 = scmp.ne.s32.totalorder %s115, %s116
      %p127 = scmp.eq.s32.totalorder %s30, 0
      %p128 = por %p126, %p127
      %p129 = scmp.ne.s32.totalorder %s115, %s116
      %p130 = scmp.eq.s32.totalorder %s31, 1
      %p131 = por %p129, %p130
      %p133 = scmp.ne.s32.totalorder %s116, %s132
      %p134 = scmp.eq.s32.totalorder %s31, 0
      %p135 = por %p133, %p134
      %s136 = ssub.s32 %s33, %s47
      %s137 = ssub.s32 %s32, %s51
      %s138 = sor.u32 %s136, %s137
      %p139 = scmp.eq.s32.totalorder %s138, 0
      %s141 = sadd.s32 %s140, 1
      %s142 = scalar_select %p139, %s140, %s141
      %p145 = pneg %p139
      %p146 = scmp.eq.s32.totalorder %s25, 1
      %p147 = por %p145, %p146
      %p148 = scmp.ne.s32.totalorder %s140, %s143
      %p149 = scmp.eq.s32.totalorder %s25, 0
      %p150 = por %p148, %p149
      %p151 = scmp.ne.s32.totalorder %s140, %s143
      %p152 = scmp.eq.s32.totalorder %s30, 1
      %p153 = por %p151, %p152
      %p154 = scmp.ne.s32.totalorder %s143, %s144
      %p155 = scmp.eq.s32.totalorder %s30, 0
      %p156 = por %p154, %p155
      %p157 = scmp.ne.s32.totalorder %s143, %s144
      %p158 = scmp.eq.s32.totalorder %s31, 1
      %p159 = por %p157, %p158
      %p161 = scmp.ne.s32.totalorder %s144, %s160
      %p162 = scmp.eq.s32.totalorder %s31, 0
      %p163 = por %p161, %p162
      %s164 = ssub.s32 %s34, %s43
      %s165 = ssub.s32 %s33, %s47
      %s166 = sor.u32 %s164, %s165
      %s167 = ssub.s32 %s32, %s51
      %s168 = sor.u32 %s166, %s167
      %p169 = scmp.eq.s32.totalorder %s168, 0
      %s171 = sadd.s32 %s170, 1
      %s172 = scalar_select %p169, %s170, %s171
      %p175 = pneg %p169
      %p176 = scmp.eq.s32.totalorder %s25, 1
      %p177 = por %p175, %p176
      %p178 = scmp.ne.s32.totalorder %s170, %s173
      %p179 = scmp.eq.s32.totalorder %s25, 0
      %p180 = por %p178, %p179
      %p181 = scmp.ne.s32.totalorder %s170, %s173
      %p182 = scmp.eq.s32.totalorder %s30, 1
      %p183 = por %p181, %p182
      %p184 = scmp.ne.s32.totalorder %s173, %s174
      %p185 = scmp.eq.s32.totalorder %s30, 0
      %p186 = por %p184, %p185
      %p187 = scmp.ne.s32.totalorder %s173, %s174
      %p188 = scmp.eq.s32.totalorder %s31, 1
      %p189 = por %p187, %p188
      %p191 = scmp.ne.s32.totalorder %s174, %s190
      %p192 = scmp.eq.s32.totalorder %s31, 0
      %p193 = por %p191, %p192
      %s194 = ssub.s32 %s34, %s43
      %s195 = ssub.s32 %s33, %s47
      %s196 = sor.u32 %s194, %s195
      %s197 = ssub.s32 %s32, %s51
      %s198 = sor.u32 %s196, %s197
      %p199 = scmp.eq.s32.totalorder %s198, 0
      %s201 = sadd.s32 %s200, 1
      %s202 = scalar_select %p199, %s200, %s201
      %p205 = pneg %p199
      %p206 = scmp.eq.s32.totalorder %s25, 1
      %p207 = por %p205, %p206
      %p208 = scmp.ne.s32.totalorder %s200, %s203
      %p209 = scmp.eq.s32.totalorder %s25, 0
      %p210 = por %p208, %p209
      %p211 = scmp.ne.s32.totalorder %s200, %s203
      %p212 = scmp.eq.s32.totalorder %s30, 1
      %p213 = por %p211, %p212
      %p214 = scmp.ne.s32.totalorder %s203, %s204
      %p215 = scmp.eq.s32.totalorder %s30, 0
      %p216 = por %p214, %p215
      %p217 = scmp.ne.s32.totalorder %s203, %s204
      %p218 = scmp.eq.s32.totalorder %s31, 1
      %p219 = por %p217, %p218
      %p221 = scmp.ne.s32.totalorder %s204, %s220
      %p222 = scmp.eq.s32.totalorder %s31, 0
      %p223 = por %p221, %p222
      %p224 = scmp.le.s32.totalorder 1, %s25
      %p225 = scmp.lt.s32.totalorder %s25, 3
      %p226 = pnand %p224, %p225
      %p227 = pneg %p226
      // Predicated region
      $region9: #{tpu_custom_call.1} parent=5 // pred_check
        _
      $region10: #{tpu_custom_call.1} parent=5 // pred_check_branch
        %229 = sbr.rel (%p226) target = $region12
      $region11: #{tpu_custom_call.1} parent=5 // pred_region
        %s230 = ssub.s32 %s25, 1
        // Predicated region
        $region13: #{tpu_custom_call.1} parent=11 // pred_check
          %p231 = pneg %p128
        $region14: #{tpu_custom_call.1} parent=11 // pred_check_branch
          %233 = sbr.rel (%p231) target = $region16
        $region15: #{tpu_custom_call.1} parent=11 // pred_region
          %235 = vsyncadd [#allocation6], 0
          %s236 = sadd.s32 %s35, %s36
          %s237 = smul.addr %s236, 4
          %s238 = scalar_lea.hbm %s2, %s237
          %s239 = sshll.u32 %s238, 4
          %s240 = int_to_ptr.hbm [resolvable:$true] %s239
          %s241 = sshll.u32 [#allocation7], 4
          %s242 = int_to_ptr.vmem [resolvable:$true] %s241
          %247 = dma.hbm_to_vmem [thread:$0]  %s240, 256, %s242, [#allocation6], 64, 64, 4
        $region16: #{tpu_custom_call.1} parent=11 // pred_fallthru
          _
        // Predicated region
        $region17: #{tpu_custom_call.1} parent=11 // pred_check
          %p248 = pneg %p156
        $region18: #{tpu_custom_call.1} parent=11 // pred_check_branch
          %250 = sbr.rel (%p248) target = $region20
        $region19: #{tpu_custom_call.1} parent=11 // pred_region
          %252 = vsyncadd [#allocation9], 0
          %s253 = sadd.s32 %s35, %s36
          %s254 = smul.addr %s253, 4
          %s255 = scalar_lea.hbm %s3, %s254
          %s256 = sshll.u32 %s255, 4
          %s257 = int_to_ptr.hbm [resolvable:$true] %s256
          %s258 = sshll.u32 [#allocation8], 4
          %s259 = int_to_ptr.vmem [resolvable:$true] %s258
          %264 = dma.hbm_to_vmem [thread:$0]  %s257, 256, %s259, [#allocation9], 64, 64, 4
        $region20: #{tpu_custom_call.1} parent=11 // pred_fallthru
          _
      $region12: #{tpu_custom_call.1} parent=5 // pred_fallthru
        _
      %p265 = scmp.lt.s32.totalorder %s25, 2
      // Predicated region
      $region21: #{tpu_custom_call.1} parent=5 // pred_check
        %p266 = pneg %p265
      $region22: #{tpu_custom_call.1} parent=5 // pred_check_branch
        %268 = sbr.rel (%p266) target = $region24
      $region23: #{tpu_custom_call.1} parent=5 // pred_region
        // Predicated region
        $region25: #{tpu_custom_call.1} parent=23 // pred_check
          %p269 = pneg %p66
        $region26: #{tpu_custom_call.1} parent=23 // pred_check_branch
          %271 = sbr.rel (%p269) target = $region28
        $region27: #{tpu_custom_call.1} parent=23 // pred_region
          %s272 = sand.u32 %s56, 1
          %s273 = scalar_lea.sflag [#allocation3], %s272
          %s274 = sand.u32 %s56, 1
          %s275 = smul.addr %s274, 4
          %s276 = scalar_lea.vmem [#allocation2], %s275
          %278 = vsyncadd %s273, 0
          %s279 = sadd.s32 %s32, %s34
          %s280 = smul.addr %s279, 4
          %s281 = scalar_lea.hbm %s0, %s280
          %s283 = sshll.u32 %s281, 4
          %s284 = int_to_ptr.hbm [resolvable:$true] %s283
          %s285 = sshll.u32 %s276, 4
          %s286 = int_to_ptr.vmem [resolvable:$true] %s285
          %288 = dma.hbm_to_vmem [thread:$0]  %s284, 64, %s286, %s273
        $region28: #{tpu_custom_call.1} parent=23 // pred_fallthru
          _
        // Predicated region
        $region29: #{tpu_custom_call.1} parent=23 // pred_check
          %p289 = pneg %p94
        $region30: #{tpu_custom_call.1} parent=23 // pred_check_branch
          %291 = sbr.rel (%p289) target = $region32
        $region31: #{tpu_custom_call.1} parent=23 // pred_region
          %s292 = sand.u32 %s25, 1
          %s293 = scalar_lea.sflag [#allocation6], %s292
          %s294 = sand.u32 %s84, 1
          %s295 = smul.addr %s294, 4
          %s296 = scalar_lea.vmem [#allocation5], %s295
          %298 = vsyncadd %s293, 0
          %s299 = sadd.s32 %s32, %s34
          %s300 = smul.addr %s299, 4
          %s301 = scalar_lea.hbm %s1, %s300
          %s303 = sshll.u32 %s301, 4
          %s304 = int_to_ptr.hbm [resolvable:$true] %s303
          %s305 = sshll.u32 %s296, 4
          %s306 = int_to_ptr.vmem [resolvable:$true] %s305
          %308 = dma.hbm_to_vmem [thread:$0]  %s304, 64, %s306, %s293
        $region32: #{tpu_custom_call.1} parent=23 // pred_fallthru
          _
      $region24: #{tpu_custom_call.1} parent=5 // pred_fallthru
        _
      %p309 = scmp.le.s32.totalorder 1, %s25
      %p310 = scmp.lt.s32.totalorder %s25, 3
      %p311 = pnand %p309, %p310
      %p312 = pneg %p311
      // Predicated region
      $region33: #{tpu_custom_call.1} parent=5 // pred_check
        _
      $region34: #{tpu_custom_call.1} parent=5 // pred_check_branch
        %314 = sbr.rel (%p311) target = $region36
      $region35: #{tpu_custom_call.1} parent=5 // pred_region
        %s315 = ssub.s32 %s25, 1
        %s316 = sand.u32 %s59, 1
        %s317 = scalar_lea.sflag [#allocation3], %s316
        %s318 = sand.u32 %s59, 1
        %s319 = smul.addr %s318, 4
        %s320 = scalar_lea.vmem [#allocation2], %s319
        // Predicated region
        $region37: #{tpu_custom_call.1} parent=35 // pred_check
          %p321 = pneg %p72
        $region38: #{tpu_custom_call.1} parent=35 // pred_check_branch
          %323 = sbr.rel (%p321) target = $region40
        $region39: #{tpu_custom_call.1} parent=35 // pred_region
          %325 = dma.done %s317, 64
        $region40: #{tpu_custom_call.1} parent=35 // pred_fallthru
          _
        %s326 = sand.u32 %s30, 1
        %s327 = scalar_lea.sflag [#allocation6], %s326
        %s328 = sand.u32 %s87, 1
        %s329 = smul.addr %s328, 4
        %s330 = scalar_lea.vmem [#allocation5], %s329
        // Predicated region
        $region41: #{tpu_custom_call.1} parent=35 // pred_check
          %p331 = pneg %p100
        $region42: #{tpu_custom_call.1} parent=35 // pred_check_branch
          %333 = sbr.rel (%p331) target = $region44
        $region43: #{tpu_custom_call.1} parent=35 // pred_region
          %335 = dma.done %s327, 64
        $region44: #{tpu_custom_call.1} parent=35 // pred_fallthru
          _
        // Predicated region
        $region45: #{tpu_custom_call.1} parent=35 // pred_check
          %p336 = pneg %p128
        $region46: #{tpu_custom_call.1} parent=35 // pred_check_branch
          %338 = sbr.rel (%p336) target = $region48
        $region47: #{tpu_custom_call.1} parent=35 // pred_region
          %340 = dma.done [#allocation6], 256
        $region48: #{tpu_custom_call.1} parent=35 // pred_fallthru
          _
        // Predicated region
        $region49: #{tpu_custom_call.1} parent=35 // pred_check
          %p341 = pneg %p156
        $region50: #{tpu_custom_call.1} parent=35 // pred_check_branch
          %343 = sbr.rel (%p341) target = $region52
        $region51: #{tpu_custom_call.1} parent=35 // pred_region
          %345 = dma.done [#allocation9], 256
        $region52: #{tpu_custom_call.1} parent=35 // pred_fallthru
          _
        %s346 = sand.u32 %s59, 1
        %s347 = scalar_lea.sflag [#allocation3], %s346
        %s348 = sand.u32 %s59, 1
        %s349 = smul.addr %s348, 4
        %s350 = scalar_lea.vmem [#allocation2], %s349
        %p351 = pneg %p72
        %p352 = pneg %p69
        %s353 = sand.u32 %s30, 1
        %s354 = scalar_lea.sflag [#allocation6], %s353
        %s355 = sand.u32 %s87, 1
        %s356 = smul.addr %s355, 4
        %s357 = scalar_lea.vmem [#allocation5], %s356
        %p358 = pneg %p100
        %p359 = pneg %p97
        %p360 = pneg %p128
        %p361 = pneg %p125
        %p362 = pneg %p156
        %p363 = pneg %p153
        %p364 = pneg %p186
        %p365 = pneg %p183
        %s366 = sand.u32 %s173, 1
        %s367 = scalar_lea.sflag [#allocation4], %s366
        %s368 = sand.u32 %s173, 1
        %s369 = smul.addr %s368, 4
        %s370 = scalar_lea.vmem [#allocation10], %s369
        %p371 = pneg %p216
        %p372 = pneg %p213
        %s373 = sand.u32 %s203, 1
        %s374 = scalar_lea.sflag [#allocation12], %s373
        %s375 = sand.u32 %s203, 1
        %s376 = smul.addr %s375, 4
        %s377 = scalar_lea.vmem [#allocation11], %s376
        %v378 = vld [vmem:[#allocation7] sm:$0xf]
        %v379 = vld [vmem:[#allocation8] sm:$0xf]
        %v380 = vld [vmem:[%s320] sm:$0x1]
        %v381 = vld [vmem:[%s330] sm:$0x1]
        %v382 = vperm.slane %v380, 0
        %v383 = vperm.slane %v381, 0
        %v384 = vmul.f32 %v382, %v378
        %v385 = vmul.f32 %v383, %v379
        %v386 = vsub.f32 %v384, %v385
        %v387 = vadd.f32 %v386, 0.0
        %v388 = vmul.f32 %v382, %v379
        %v389 = vmul.f32 %v383, %v378
        %v390 = vadd.f32 %v388, %v389
        %v391 = vadd.f32 %v390, 0.0
        %s392 = scalar_lea.vmem [#allocation7], 4
        %v393 = vld [vmem:[%s392] sm:$0xf]
        %s394 = scalar_lea.vmem [#allocation8], 4
        %v395 = vld [vmem:[%s394] sm:$0xf]
        %v396 = vld [vmem:[%s320 + $0x1] sm:$0x1]
        %v397 = vld [vmem:[%s330 + $0x1] sm:$0x1]
        %v398 = vperm.slane %v396, 0
        %v399 = vperm.slane %v397, 0
        %v400 = vmul.f32 %v398, %v393
        %v401 = vmul.f32 %v399, %v395
        %v402 = vsub.f32 %v400, %v401
        %v403 = vadd.f32 %v387, %v402
        %v404 = vmul.f32 %v398, %v395
        %v405 = vmul.f32 %v399, %v393
        %v406 = vadd.f32 %v404, %v405
        %v407 = vadd.f32 %v391, %v406
        %s408 = scalar_lea.vmem [#allocation7], 8
        %v409 = vld [vmem:[%s408] sm:$0xf]
        %s410 = scalar_lea.vmem [#allocation8], 8
        %v411 = vld [vmem:[%s410] sm:$0xf]
        %v412 = vld [vmem:[%s320 + $0x2] sm:$0x1]
        %v413 = vld [vmem:[%s330 + $0x2] sm:$0x1]
        %v414 = vperm.slane %v412, 0
        %v415 = vperm.slane %v413, 0
        %v416 = vmul.f32 %v414, %v409
        %v417 = vmul.f32 %v415, %v411
        %v418 = vsub.f32 %v416, %v417
        %v419 = vadd.f32 %v403, %v418
        %v420 = vmul.f32 %v414, %v411
        %v421 = vmul.f32 %v415, %v409
        %v422 = vadd.f32 %v420, %v421
        %v423 = vadd.f32 %v407, %v422
        %s424 = scalar_lea.vmem [#allocation7], 12
        %v425 = vld [vmem:[%s424] sm:$0xf]
        %s426 = scalar_lea.vmem [#allocation8], 12
        %v427 = vld [vmem:[%s426] sm:$0xf]
        %v428 = vld [vmem:[%s320 + $0x3] sm:$0x1]
        %v429 = vld [vmem:[%s330 + $0x3] sm:$0x1]
        %v430 = vperm.slane %v428, 0
        %v431 = vperm.slane %v429, 0
        %v432 = vmul.f32 %v430, %v425
        %v433 = vmul.f32 %v431, %v427
        %v434 = vsub.f32 %v432, %v433
        %v435 = vadd.f32 %v419, %v434
        %v436 = vmul.f32 %v430, %v427
        %v437 = vmul.f32 %v431, %v425
        %v438 = vadd.f32 %v436, %v437
        %v439 = vadd.f32 %v423, %v438
        %440 = vst [vmem:[%s370] sm:$0xf] %v435
        %441 = vst [vmem:[%s377] sm:$0xf] %v439
        %s442 = sand.u32 %s173, 1
        %s443 = scalar_lea.sflag [#allocation4], %s442
        %s444 = sand.u32 %s173, 1
        %s445 = smul.addr %s444, 4
        %s446 = scalar_lea.vmem [#allocation10], %s445
        %s447 = sand.u32 %s203, 1
        %s448 = scalar_lea.sflag [#allocation12], %s447
        %s449 = sand.u32 %s203, 1
        %s450 = smul.addr %s449, 4
        %s451 = scalar_lea.vmem [#allocation11], %s450
        // Predicated region
        $region53: #{tpu_custom_call.1} parent=35 // pred_check
          %p452 = pneg %p183
        $region54: #{tpu_custom_call.1} parent=35 // pred_check_branch
          %454 = sbr.rel (%p452) target = $region56
        $region55: #{tpu_custom_call.1} parent=35 // pred_region
          %456 = vsyncadd %s443, 0
          %s457 = sadd.s32 %s35, %s36
          %s458 = sadd.s32 %s457, %s37
          %s459 = smul.addr %s458, 4
          %s460 = scalar_lea.hbm %s4, %s459
          %s462 = sshll.u32 %s446, 4
          %s463 = int_to_ptr.vmem [resolvable:$true] %s462
          %s464 = sshll.u32 %s460, 4
          %s465 = int_to_ptr.hbm [resolvable:$true] %s464
          %467 = dma.vmem_to_hbm [thread:$0]  %s463, 64, %s465, %s443
        $region56: #{tpu_custom_call.1} parent=35 // pred_fallthru
          _
        // Predicated region
        $region57: #{tpu_custom_call.1} parent=35 // pred_check
          %p468 = pneg %p213
        $region58: #{tpu_custom_call.1} parent=35 // pred_check_branch
          %470 = sbr.rel (%p468) target = $region60
        $region59: #{tpu_custom_call.1} parent=35 // pred_region
          %472 = vsyncadd %s448, 0
          %s473 = sadd.s32 %s35, %s36
          %s474 = sadd.s32 %s473, %s37
          %s475 = smul.addr %s474, 4
          %s476 = scalar_lea.hbm %s5, %s475
          %s478 = sshll.u32 %s451, 4
          %s479 = int_to_ptr.vmem [resolvable:$true] %s478
          %s480 = sshll.u32 %s476, 4
          %s481 = int_to_ptr.hbm [resolvable:$true] %s480
          %483 = dma.vmem_to_hbm [thread:$0]  %s479, 64, %s481, %s448
        $region60: #{tpu_custom_call.1} parent=35 // pred_fallthru
          _
      $region36: #{tpu_custom_call.1} parent=5 // pred_fallthru
        _
      %p484 = scmp.le.s32.totalorder 2, %s25
      // Predicated region
      $region61: #{tpu_custom_call.1} parent=5 // pred_check
        %p485 = pneg %p484
      $region62: #{tpu_custom_call.1} parent=5 // pred_check_branch
        %487 = sbr.rel (%p485) target = $region64
      $region63: #{tpu_custom_call.1} parent=5 // pred_region
        %s488 = ssub.s32 %s25, 2
        // Predicated region
        $region65: #{tpu_custom_call.1} parent=63 // pred_check
          %p489 = pneg %p189
        $region66: #{tpu_custom_call.1} parent=63 // pred_check_branch
          %491 = sbr.rel (%p489) target = $region68
        $region67: #{tpu_custom_call.1} parent=63 // pred_region
          %s492 = sand.u32 %s174, 1
          %s493 = scalar_lea.sflag [#allocation4], %s492
          %s494 = sand.u32 %s174, 1
          %s495 = smul.addr %s494, 4
          %s496 = scalar_lea.vmem [#allocation10], %s495
          %498 = dma.done %s493, 64
        $region68: #{tpu_custom_call.1} parent=63 // pred_fallthru
          _
        // Predicated region
        $region69: #{tpu_custom_call.1} parent=63 // pred_check
          %p499 = pneg %p219
        $region70: #{tpu_custom_call.1} parent=63 // pred_check_branch
          %501 = sbr.rel (%p499) target = $region72
        $region71: #{tpu_custom_call.1} parent=63 // pred_region
          %s502 = sand.u32 %s204, 1
          %s503 = scalar_lea.sflag [#allocation12], %s502
          %s504 = sand.u32 %s204, 1
          %s505 = smul.addr %s504, 4
          %s506 = scalar_lea.vmem [#allocation11], %s505
          %508 = dma.done %s503, 64
        $region72: #{tpu_custom_call.1} parent=63 // pred_fallthru
          _
      $region64: #{tpu_custom_call.1} parent=5 // pred_fallthru
        _
    $region6: #{tpu_custom_call.1} parent=1 // loop_footer
      %s29 = sadd.s32 1, %s25
    $region7: #{tpu_custom_call.1} parent=1 // loop_footer_branch
      %24 = sbr.rel target = $region3
    $region8: #{tpu_custom_call.1} parent=1 // loop_exit
      _
    %509 = vsyncpa [#allocation3], 1
    %s510 = scalar_lea.sflag [#allocation3], 1
    %511 = vsyncpa %s510, 1
    %512 = vsyncpa [#allocation6], 1
    %s513 = scalar_lea.sflag [#allocation6], 1
    %514 = vsyncpa %s513, 1
    %515 = vsyncpa [#allocation9], 1
    %516 = vsyncpa [#allocation4], 1
    %s517 = scalar_lea.sflag [#allocation4], 1
    %518 = vsyncpa %s517, 1
    %519 = vsyncpa [#allocation12], 1
    %s520 = scalar_lea.sflag [#allocation12], 1
    %521 = vsyncpa %s520, 1

</llo_original>
